<compile_context>
chip_gen: v7x
topology: tpu7x:2x2x1
jax: 0.10.0
libtpu: 0.0.40
codegen_flags: <defaults>
</compile_context>

<pallas_src>
import functools

import jax
import jax.numpy as jnp
from jax.experimental import pallas as pl
from jax.experimental.pallas import tpu as pltpu


def _distill_kernel(s_ref, t_ref, tgt_ref, out_ref, *, alpha, temperature, n_valid):
    # s_ref / t_ref: (TB, C) logits in VMEM; tgt_ref: (TB, 1) int32 labels in VMEM.
    s = s_ref[...].astype(jnp.float32)
    tgt = tgt_ref[...]                                     # (TB, 1) int32
    TB, C = s.shape
    inv_t = 1.0 / temperature

    cols = jax.lax.broadcasted_iota(jnp.int32, (TB, C), 1)
    tgt_mask = cols == tgt                                 # (TB, C) bool

    # ---------- phase 1: hard CE per row (no one-hot float plane, no full log_softmax) ----
    s_max = jnp.max(s, axis=1, keepdims=True)              # (TB, 1)
    s_sh = s - s_max                                       # (TB, C)
    s_lse = jnp.log(jnp.sum(jnp.exp(s_sh), axis=1, keepdims=True))       # (TB, 1)
    s_tgt = jnp.sum(jnp.where(tgt_mask, s_sh, 0.0), axis=1, keepdims=True)  # (TB, 1)
    hard_row = s_lse - s_tgt                               # -log_softmax(s)[tgt], (TB, 1)

    # ---------- phase 2: soft KL per row (teacher normalization kept on the (TB,1) column) --
    # log_softmax(s/T) = s_sh/T - log(sum exp(s_sh/T))   (max(s/T) == s_max/T)
    st_sh = s_sh * inv_t                                   # (TB, C)
    st_lse = jnp.log(jnp.sum(jnp.exp(st_sh), axis=1, keepdims=True))     # (TB, 1)

    t = t_ref[...].astype(jnp.float32)
    t_max = jnp.max(t, axis=1, keepdims=True)
    tt_sh = (t - t_max) * inv_t                            # (TB, C)
    tt_exp = jnp.exp(tt_sh)                                # (TB, C)
    tt_sum = jnp.sum(tt_exp, axis=1, keepdims=True)        # (TB, 1)

    # KL(p_t || p_s)_row = (1/tt_sum) * sum_c tt_exp * (tt_sh - st_sh) + (st_lse - log tt_sum)
    cross = jnp.sum(tt_exp * (tt_sh - st_sh), axis=1, keepdims=True)     # (TB, 1)
    kl_row = cross / tt_sum + (st_lse - jnp.log(tt_sum))                 # (TB, 1)

    combined = (alpha * hard_row
                + (1.0 - alpha) * (temperature * temperature) * kl_row)  # (TB, 1)

    # Mask rows added by batch padding.
    row_ids = jax.lax.broadcasted_iota(jnp.int32, (TB, 1), 0) + pl.program_id(0) * TB
    combined = jnp.where(row_ids < n_valid, combined, 0.0)

    partial = jnp.sum(combined)
    # Lane-dense (1, 128) output block -> unmasked vector store; wrapper reads lane 0.
    out_ref[...] = jnp.full((1, 128), partial, dtype=jnp.float32)


def _round_up(x: int, m: int) -> int:
    return ((x + m - 1) // m) * m


def distillation_loss(student_outputs, teacher_outputs, targets,
                      alpha: float = 0.5, temperature: float = 3.0):
    """Pallas TPU implementation of DistillationLoss.forward.

    student_outputs, teacher_outputs: (B, C) float logits (f32 or bf16)
    targets: (B,) integer class labels
    Returns a scalar float32 loss.
    """
    B, C = student_outputs.shape

    # Batch tile size: 2 logit inputs x 2 pipeline buffers x TB*C*4B must fit a ~32 MiB
    # budget (safe on v5e/v6e/v7x with the explicit vmem_limit below).
    bytes_per_row = C * 4
    budget = 32 * 1024 * 1024
    tb_cap = max(8, (budget // (4 * bytes_per_row)) // 8 * 8)
    TB = min(512, tb_cap, _round_up(B, 8))
    # TODO(synk): for vocab-scale C (>=128k) add a class-axis grid dimension with an
    # online max/logsumexp accumulator (flash-softmax style) instead of full-row tiles.

    B_pad = _round_up(B, TB)
    nb = B_pad // TB
    pad = B_pad - B
    if pad:
        student_outputs = jnp.pad(student_outputs, ((0, pad), (0, 0)))
        teacher_outputs = jnp.pad(teacher_outputs, ((0, pad), (0, 0)))
        targets_p = jnp.pad(targets.astype(jnp.int32), ((0, pad),))
    else:
        targets_p = targets.astype(jnp.int32)
    tgt2d = targets_p.reshape(B_pad, 1)

    kernel = functools.partial(_distill_kernel, alpha=float(alpha),
                               temperature=float(temperature), n_valid=B)

    partials = pl.pallas_call(
        kernel,
        out_shape=jax.ShapeDtypeStruct((nb, 128), jnp.float32),
        grid=(nb,),
        in_specs=[
            pl.BlockSpec((TB, C), lambda i: (i, 0)),
            pl.BlockSpec((TB, C), lambda i: (i, 0)),
            pl.BlockSpec((TB, 1), lambda i: (i, 0)),
        ],
        out_specs=pl.BlockSpec((1, 128), lambda i: (i, 0)),
        compiler_params=pltpu.CompilerParams(
            dimension_semantics=("parallel",),
            vmem_limit_bytes=48 * 1024 * 1024,
        ),
    )(student_outputs, teacher_outputs, tgt2d)

    return jnp.sum(partials[:, 0]) / B


def _reference_loss(s, t, tgt, alpha=0.5, temperature=3.0):
    # Pure-JAX reference mirroring the PyTorch forward, for a sanity check.
    log_sm = jax.nn.log_softmax(s, axis=1)
    hard = -jnp.mean(jnp.take_along_axis(log_sm, tgt[:, None], axis=1))
    log_ps = jax.nn.log_softmax(s / temperature, axis=1)
    p_t = jax.nn.softmax(t / temperature, axis=1)
    log_pt = jax.nn.log_softmax(t / temperature, axis=1)
    kl = jnp.sum(p_t * (log_pt - log_ps)) / s.shape[0]
    soft = kl * temperature ** 2
    return alpha * hard + (1 - alpha) * soft


if __name__ == "__main__":
    key = jax.random.PRNGKey(0)
    k1, k2, k3 = jax.random.split(key, 3)
    B, C = 8, 32
    student = jax.random.normal(k1, (B, C), dtype=jnp.float32) * 2.0
    teacher = jax.random.normal(k2, (B, C), dtype=jnp.float32) * 2.0
    targets = jax.random.randint(k3, (B,), 0, C, dtype=jnp.int32)

    loss = distillation_loss(student, teacher, targets, alpha=0.5, temperature=3.0)
    loss = jax.block_until_ready(loss)

    ref = _reference_loss(student, teacher, targets, alpha=0.5, temperature=3.0)
    assert jnp.allclose(loss, ref, atol=1e-5, rtol=1e-5), (loss, ref)

    # Also exercise a multi-block / padded-batch path (B not a multiple of the tile).
    B2, C2 = 37, 256
    k4, k5, k6 = jax.random.split(k1, 3)
    s2 = jax.random.normal(k4, (B2, C2), dtype=jnp.float32) * 2.0
    t2 = jax.random.normal(k5, (B2, C2), dtype=jnp.float32) * 2.0
    y2 = jax.random.randint(k6, (B2,), 0, C2, dtype=jnp.int32)
    loss2 = jax.block_until_ready(distillation_loss(s2, t2, y2, alpha=0.5, temperature=3.0))
    ref2 = _reference_loss(s2, t2, y2, alpha=0.5, temperature=3.0)
    assert jnp.allclose(loss2, ref2, atol=1e-5, rtol=1e-5), (loss2, ref2)

    print("KERNEL_OK")
</pallas_src>

<mosaic_0001>
module attributes {stable_mosaic.version = 11 : i64} {
  func.func @_distill_kernel(%arg0: i32, %arg1: memref<8x32xf32, #tpu.memory_space<vmem>>, %arg2: memref<8x32xf32, #tpu.memory_space<vmem>>, %arg3: memref<8x1xi32, #tpu.memory_space<vmem>>, %arg4: memref<1x128xf32, #tpu.memory_space<vmem>>) attributes {dimension_semantics = [#tpu.dimension_semantics<parallel>], iteration_bounds = array<i64: 1>, scalar_prefetch = 0 : i64, scratch_operands = 0 : i64, tpu.core_type = #tpu.core_type<tc>, window_params = [{transform_indices = @transform_0, window_bounds = array<i64: 8, 32>}, {transform_indices = @transform_1, window_bounds = array<i64: 8, 32>}, {transform_indices = @transform_2, window_bounds = array<i64: 8, 1>}, {transform_indices = @transform_3, window_bounds = array<i64: 1, 128>}]} {
    %c0 = arith.constant 0 : index
    %c0_0 = arith.constant 0 : index
    %0 = vector.load %arg1[%c0, %c0_0] : memref<8x32xf32, #tpu.memory_space<vmem>>, vector<8x32xf32>
    %c0_1 = arith.constant 0 : index
    %c0_2 = arith.constant 0 : index
    %1 = vector.load %arg3[%c0_1, %c0_2] : memref<8x1xi32, #tpu.memory_space<vmem>>, vector<8x1xi32>
    %2 = tpu.iota {dimensions = array<i32: 1>} : vector<8x32xi32>
    %3 = vector.broadcast %1 : vector<8x1xi32> to vector<8x32xi32>
    %4 = arith.cmpi eq, %2, %3 : vector<8x32xi32>
    %cst = arith.constant dense<0xFF800000> : vector<8xf32>
    %5 = vector.multi_reduction <maximumf>, %0, %cst [1] : vector<8x32xf32> to vector<8xf32>
    %6 = vector.shape_cast %5 : vector<8xf32> to vector<8x1xf32>
    %7 = vector.broadcast %6 : vector<8x1xf32> to vector<8x32xf32>
    %8 = arith.subf %0, %7 : vector<8x32xf32>
    %9 = math.exp %8 : vector<8x32xf32>
    %cst_3 = arith.constant dense<0.000000e+00> : vector<8xf32>
    %10 = vector.multi_reduction <add>, %9, %cst_3 [1] : vector<8x32xf32> to vector<8xf32>
    %11 = vector.shape_cast %10 : vector<8xf32> to vector<8x1xf32>
    %12 = math.log %11 : vector<8x1xf32>
    %cst_4 = arith.constant 0.000000e+00 : f32
    %13 = vector.broadcast %cst_4 : f32 to vector<8x32xf32>
    %14 = arith.select %4, %8, %13 : vector<8x32xi1>, vector<8x32xf32>
    %cst_5 = arith.constant dense<0.000000e+00> : vector<8xf32>
    %15 = vector.multi_reduction <add>, %14, %cst_5 [1] : vector<8x32xf32> to vector<8xf32>
    %16 = vector.shape_cast %15 : vector<8xf32> to vector<8x1xf32>
    %17 = arith.subf %12, %16 : vector<8x1xf32>
    %cst_6 = arith.constant 0.333333343 : f32
    %18 = vector.broadcast %cst_6 : f32 to vector<8x32xf32>
    %19 = arith.mulf %8, %18 : vector<8x32xf32>
    %20 = math.exp %19 : vector<8x32xf32>
    %cst_7 = arith.constant dense<0.000000e+00> : vector<8xf32>
    %21 = vector.multi_reduction <add>, %20, %cst_7 [1] : vector<8x32xf32> to vector<8xf32>
    %22 = vector.shape_cast %21 : vector<8xf32> to vector<8x1xf32>
    %23 = math.log %22 : vector<8x1xf32>
    %c0_8 = arith.constant 0 : index
    %c0_9 = arith.constant 0 : index
    %24 = vector.load %arg2[%c0_8, %c0_9] : memref<8x32xf32, #tpu.memory_space<vmem>>, vector<8x32xf32>
    %cst_10 = arith.constant dense<0xFF800000> : vector<8xf32>
    %25 = vector.multi_reduction <maximumf>, %24, %cst_10 [1] : vector<8x32xf32> to vector<8xf32>
    %26 = vector.shape_cast %25 : vector<8xf32> to vector<8x1xf32>
    %27 = vector.broadcast %26 : vector<8x1xf32> to vector<8x32xf32>
    %28 = arith.subf %24, %27 : vector<8x32xf32>
    %cst_11 = arith.constant 0.333333343 : f32
    %29 = vector.broadcast %cst_11 : f32 to vector<8x32xf32>
    %30 = arith.mulf %28, %29 : vector<8x32xf32>
    %31 = math.exp %30 : vector<8x32xf32>
    %cst_12 = arith.constant dense<0.000000e+00> : vector<8xf32>
    %32 = vector.multi_reduction <add>, %31, %cst_12 [1] : vector<8x32xf32> to vector<8xf32>
    %33 = vector.shape_cast %32 : vector<8xf32> to vector<8x1xf32>
    %34 = arith.subf %30, %19 : vector<8x32xf32>
    %35 = arith.mulf %31, %34 : vector<8x32xf32>
    %cst_13 = arith.constant dense<0.000000e+00> : vector<8xf32>
    %36 = vector.multi_reduction <add>, %35, %cst_13 [1] : vector<8x32xf32> to vector<8xf32>
    %37 = vector.shape_cast %36 : vector<8xf32> to vector<8x1xf32>
    %38 = arith.divf %37, %33 : vector<8x1xf32>
    %39 = math.log %33 : vector<8x1xf32>
    %40 = arith.subf %23, %39 : vector<8x1xf32>
    %41 = arith.addf %38, %40 : vector<8x1xf32>
    %cst_14 = arith.constant 5.000000e-01 : f32
    %42 = vector.broadcast %cst_14 : f32 to vector<8x1xf32>
    %43 = arith.mulf %42, %17 : vector<8x1xf32>
    %cst_15 = arith.constant 4.500000e+00 : f32
    %44 = vector.broadcast %cst_15 : f32 to vector<8x1xf32>
    %45 = arith.mulf %44, %41 : vector<8x1xf32>
    %46 = arith.addf %43, %45 : vector<8x1xf32>
    %47 = tpu.iota {dimensions = array<i32: 0>} : vector<8x1xi32>
    %c8_i32 = arith.constant 8 : i32
    %48 = arith.muli %arg0, %c8_i32 : i32
    %49 = vector.broadcast %48 : i32 to vector<8x1xi32>
    %50 = arith.addi %47, %49 : vector<8x1xi32>
    %c8_i32_16 = arith.constant 8 : i32
    %51 = vector.broadcast %c8_i32_16 : i32 to vector<8x1xi32>
    %52 = arith.cmpi slt, %50, %51 : vector<8x1xi32>
    %cst_17 = arith.constant 0.000000e+00 : f32
    %53 = vector.broadcast %cst_17 : f32 to vector<8x1xf32>
    %54 = arith.select %52, %46, %53 : vector<8x1xi1>, vector<8x1xf32>
    %55 = vector.shape_cast %54 : vector<8x1xf32> to vector<1x8x1xf32>
    %cst_18 = arith.constant dense<0.000000e+00> : vector<1xf32>
    %56 = vector.multi_reduction <add>, %55, %cst_18 [1, 2] : vector<1x8x1xf32> to vector<1xf32>
    %57 = vector.shape_cast %56 : vector<1xf32> to vector<1x1x1xf32>
    %58 = vector.extract %57[0, 0, 0] : f32 from vector<1x1x1xf32>
    %59 = vector.broadcast %58 : f32 to vector<1x128xf32>
    %c0_19 = arith.constant 0 : index
    %c0_20 = arith.constant 0 : index
    %60 = vector.load %arg4[%c0_19, %c0_20] : memref<1x128xf32, #tpu.memory_space<vmem>>, vector<1x128xf32>
    tpu.vector_store %arg4[%c0_19, %c0_20], %59 {strides = array<i32>} : memref<1x128xf32, #tpu.memory_space<vmem>>, vector<1x128xf32>,
    return
  }
  func.func @transform_0(%arg0: i32) -> (i32, i32) {
    %c0_i32 = arith.constant 0 : i32
    %c0_i32_0 = arith.constant 0 : i32
    return %arg0, %c0_i32 : i32, i32
  }
  func.func @transform_1(%arg0: i32) -> (i32, i32) {
    %c0_i32 = arith.constant 0 : i32
    %c0_i32_0 = arith.constant 0 : i32
    return %arg0, %c0_i32 : i32, i32
  }
  func.func @transform_2(%arg0: i32) -> (i32, i32) {
    %c0_i32 = arith.constant 0 : i32
    %c0_i32_0 = arith.constant 0 : i32
    return %arg0, %c0_i32 : i32, i32
  }
  func.func @transform_3(%arg0: i32) -> (i32, i32) {
    %c0_i32 = arith.constant 0 : i32
    %c0_i32_0 = arith.constant 0 : i32
    return %arg0, %c0_i32 : i32, i32
  }
}

</mosaic_0001>

<llo_original>
// kernel: tpu_custom_call.1
$region0: #{tpu_custom_call.1}
  #allocation0 [shape = 'u32[]', space=smem, size = 0x4, offset = 0x4, fixed_abs, tag = 'smem constant byte address 0x4 - core index']
  #allocation1 [shape = 'u32[144,128]{1,0:T(1,128)}', space=vmem, size = 0x12000, scoped, tag = 'internal scratch']
  %s0 = inlined_call_operand.vmem [shape: f32[8,32], index: 0, kind: input, shape index: {}]
  %s1 = inlined_call_operand.hbm [shape: f32[8,32], index: 1, kind: input, shape index: {}]
  %s2 = inlined_call_operand.vmem [shape: s32[8,1], index: 2, kind: input, shape index: {}]
  %s3 = inlined_call_operand.hbm [shape: f32[1,128], index: 3, kind: output, shape index: {}]
  %s4 = sld [smem:[#allocation0]]
  $region26: #{tpu_custom_call.1} parent=0
    _
  %s6 = ssub.s32 1, %s4
  %s7 = scalar_select 0, %s6, %s4
  $region1: #{tpu_custom_call.1} parent=0
    #allocation2 [shape = 'u8[4096]{0}', space=vmem, size = 0x1000, scoped, tag = 'input window, operand 1, single buffered']
    #allocation3 [shape = 's32[1]{0}', space=sflag, size = 0x4, scoped, tag = 'scoped memory for tpu_custom_call.1']
    #allocation4 [shape = 's32[1]{0}', space=sflag, size = 0x4, scoped, tag = 'scoped memory for tpu_custom_call.1']
    #allocation5 [shape = 'u8[512]{0}', space=vmem, size = 0x400, scoped, tag = 'output window, operand 0, single buffered']
    %8 = vsyncpa [#allocation3], 0
    %9 = vsyncpa [#allocation4], 0
    // Predicated region
    $region2: #{tpu_custom_call.1} parent=1 // pred_check
      _
    $region3: #{tpu_custom_call.1} parent=1 // pred_check_branch
      %11 = sbr.rel (0) target = $region5
    $region4: #{tpu_custom_call.1} parent=1 // pred_region
      _
    $region5: #{tpu_custom_call.1} parent=1 // pred_fallthru
      _
    // Predicated region
    $region6: #{tpu_custom_call.1} parent=1 // pred_check
      _
    $region7: #{tpu_custom_call.1} parent=1 // pred_check_branch
      %13 = sbr.rel (0) target = $region9
    $region8: #{tpu_custom_call.1} parent=1 // pred_region
      %s15 = ssub.s32 128, 128
      %16 = vsyncadd [#allocation3], %s15
      %s18 = sshll.u32 [#allocation2], 4
      %s19 = int_to_ptr.vmem [resolvable:$true] %s18
      %21 = dma.hbm_to_vmem [thread:$0]  %s1, 128, %s19, [#allocation3]
    $region9: #{tpu_custom_call.1} parent=1 // pred_fallthru
      _
    // Predicated region
    $region10: #{tpu_custom_call.1} parent=1 // pred_check
      _
    $region11: #{tpu_custom_call.1} parent=1 // pred_check_branch
      %23 = sbr.rel (0) target = $region13
    $region12: #{tpu_custom_call.1} parent=1 // pred_region
      _
    $region13: #{tpu_custom_call.1} parent=1 // pred_fallthru
      _
    // Predicated region
    $region14: #{tpu_custom_call.1} parent=1 // pred_check
      _
    $region15: #{tpu_custom_call.1} parent=1 // pred_check_branch
      %25 = sbr.rel (0) target = $region17
    $region16: #{tpu_custom_call.1} parent=1 // pred_region
      %26 = dma.done [#allocation3], 128
    $region17: #{tpu_custom_call.1} parent=1 // pred_fallthru
      _
    %v27 = vld [vmem:[%s0] sm:$0xff]
    %v28 = vld [vmem:[%s2] sm:$0xff]
    %v29 = vlaneseq
    %v30 = vand.u32 %v29, 127
    %31 = vset.pattern.permute.xlu0 0
    %32 = vperm.xlu0 %31, %v28
    %v33 = vpop.permute.xlu0 %32
    %vm34 = vcmp.eq.s32.totalorder %v30, %v33
    %vm35 = vcmask 261120
    %v36 = vsel %vm35, %v27, -inf
    %37 = vmax.xlane.f32.xlu0 %v36
    %v38 = vpop.xlane.xlu0 %37
    %v39 = vsub.f32 %v27, %v38
    %v40 = vmul.f32 %v39, 1.442695
    %v41 = vpow.pop %v40
    %v42 = vsel %vm35, %v41, 0.0
    %43 = vadd.xlane.f32.xlu0 %v42
    %v44 = vpop.xlane.xlu0 %43
    %v45 = vlog2.pop %v44
    %v46 = vmul.f32 %v45, 0.6931472
    %v47 = vsel %vm34, %v39, 0.0
    %v48 = vsel %vm35, %v47, 0.0
    %49 = vadd.xlane.f32.xlu0 %v48
    %v50 = vpop.xlane.xlu0 %49
    %v51 = vsub.f32 %v46, %v50
    %v52 = vmul.f32 %v39, 0.33333334
    %v53 = vmul.f32 %v52, 1.442695
    %v54 = vpow.pop %v53
    %v55 = vsel %vm35, %v54, 0.0
    %56 = vadd.xlane.f32.xlu0 %v55
    %v57 = vpop.xlane.xlu0 %56
    %v58 = vlog2.pop %v57
    %v59 = vmul.f32 %v58, 0.6931472
    %v60 = vld [vmem:[#allocation2] sm:$0xff]
    %v61 = vsel %vm35, %v60, -inf
    %62 = vmax.xlane.f32.xlu0 %v61
    %v63 = vpop.xlane.xlu0 %62
    %v64 = vsub.f32 %v60, %v63
    %v65 = vmul.f32 %v64, 0.33333334
    %v66 = vmul.f32 %v65, 1.442695
    %v67 = vpow.pop %v66
    %v68 = vsel %vm35, %v67, 0.0
    %69 = vadd.xlane.f32.xlu0 %v68
    %v70 = vpop.xlane.xlu0 %69
    %v71 = vsub.f32 %v65, %v52
    %v72 = vmul.f32 %v67, %v71
    %v73 = vsel %vm35, %v72, 0.0
    %74 = vadd.xlane.f32.xlu0 %v73
    %v75 = vpop.xlane.xlu0 %74
    %v76 = vrcp.pop %v70
    %v77 = vmul.f32 %v75, %v76
    %v78 = vlog2.pop %v70
    %v79 = vmul.f32 %v78, 0.6931472
    %v80 = vsub.f32 %v59, %v79
    %v81 = vadd.f32 %v77, %v80
    %v82 = vmul.f32 %v51, 0.5
    %v83 = vmul.f32 %v81, 4.5
    %v84 = vadd.f32 %v82, %v83
    %v85 = vlaneseq
    %v86 = vshrl.u32 %v85, 7
    %s87 = smul.u32 0, 8
    %v88 = vstv %s87
    %v89 = vadd.s32 %v86, %v88
    %vm90 = vcmp.lt.s32.totalorder %v89, 8
    %v91 = vsel %vm90, %v84, 0.0
    %vm92 = vcmask 7168
    %v93 = vsel %vm92, %v91, 0.0
    %94 = vadd.xlane.f32.xlu0 %v93
    %v95 = vpop.xlane.xlu0 %94
    %v96 = vrot.slane %v95, 4
    %v97 = vadd.f32 %v95, %v96
    %v98 = vrot.slane %v97, 2
    %v99 = vadd.f32 %v97, %v98
    %v100 = vrot.slane %v99, 1
    %v101 = vadd.f32 %v99, %v100
    %s102 = vtos %v101
    %v103 = vstv %s102
    %104 = vst [vmem:[#allocation5] sm:$0x1] %v103
    // Predicated region
    $region18: #{tpu_custom_call.1} parent=1 // pred_check
      _
    $region19: #{tpu_custom_call.1} parent=1 // pred_check_branch
      %106 = sbr.rel (0) target = $region21
    $region20: #{tpu_custom_call.1} parent=1 // pred_region
      %s108 = ssub.s32 16, 16
      %109 = vsyncadd [#allocation4], %s108
      %s111 = sshll.u32 [#allocation5], 4
      %s112 = int_to_ptr.vmem [resolvable:$true] %s111
      %114 = dma.vmem_to_hbm [thread:$0]  %s112, 16, %s3, [#allocation4]
    $region21: #{tpu_custom_call.1} parent=1 // pred_fallthru
      _
    // Predicated region
    $region22: #{tpu_custom_call.1} parent=1 // pred_check
      _
    $region23: #{tpu_custom_call.1} parent=1 // pred_check_branch
      %116 = sbr.rel (0) target = $region25
    $region24: #{tpu_custom_call.1} parent=1 // pred_region
      %117 = dma.done [#allocation4], 16
    $region25: #{tpu_custom_call.1} parent=1 // pred_fallthru
      _
    %118 = vsyncpa [#allocation3], 1
    %119 = vsyncpa [#allocation4], 1

</llo_original>
